<compile_context>
chip_gen: v7x
topology: tpu7x:2x2x1
jax: 0.10.0
libtpu: 0.0.40
codegen_flags: <defaults>
</compile_context>

<pallas_src>
import jax
import jax.numpy as jnp
from jax import lax
from jax.experimental import pallas as pl
from jax.experimental.pallas import tpu as pltpu


def _cdiv(a, b):
    return (a + b - 1) // b


def _make_kernel(G, C_out, T_eff, T_tile, needs_t_mask):
    """Trace-time specialized LinearSoftPool reduction kernel."""

    def kernel(td_ref, out_ref, num_acc, den_acc):
        # td_ref : (TB, T_tile, C_blk)  input block (C_blk = G*C_out or C_tile)
        # out_ref: (TB, C_out_blk)      output block, resident across T axis
        # num_acc, den_acc: (TB, C_blk) f32 scratch accumulators
        t = pl.program_id(2)

        @pl.when(t == 0)
        def _():
            num_acc[...] = jnp.zeros_like(num_acc)
            den_acc[...] = jnp.zeros_like(den_acc)

        td = td_ref[...].astype(jnp.float32)          # (TB, T_tile, C_blk)
        if needs_t_mask:
            # Trailing partial T block: rows >= (T_eff - t*T_tile) hold
            # undefined data (Pallas partial-block semantics); zero them
            # before they touch either sum.
            row = lax.broadcasted_iota(jnp.int32, td.shape, 1)
            valid = T_eff - t * T_tile
            td = jnp.where(row < valid, td, 0.0)

        num_acc[...] += jnp.sum(td * td, axis=1)      # sum_t td^2
        den_acc[...] += jnp.sum(td, axis=1)           # sum_t td

        @pl.when(t == pl.num_programs(2) - 1)
        def _():
            num = num_acc[...]
            den = den_acc[...]
            if G > 1:
                # Fold the G time-groups packed into the lane dimension.
                num_f = num[:, 0:C_out]
                den_f = den[:, 0:C_out]
                for g in range(1, G):
                    num_f = num_f + num[:, g * C_out:(g + 1) * C_out]
                    den_f = den_f + den[:, g * C_out:(g + 1) * C_out]
                num, den = num_f, den_f
            inv = pl.reciprocal(den, approx=False)    # exact reciprocal
            out_ref[...] = (num * inv).astype(out_ref.dtype)

    return kernel


def linear_soft_pool(logits, time_decision):
    """Pallas implementation of LinearSoftPool(pooldim=1).

    logits:        signature parity with the PyTorch module; unused, never DMA'd.
    time_decision: (B, T, C)
    returns:       (B, C)
    """
    del logits  # unused by the math; deliberately not passed to the kernel

    B, T, C = time_decision.shape
    dtype = time_decision.dtype
    itemsize = jnp.dtype(dtype).itemsize

    # ---- batch blocking (no padding; trailing partial block rows discarded) -
    TB = 8 if B >= 8 else B
    b_blocks = _cdiv(B, TB)

    # ---- lane folding for small C (free metadata reshape, C is minor dim) ---
    # Largest G <= 128//C with T % G == 0 (avoids any HBM padding pass).
    if C < 128 and T > 1:
        G = 128 // C
        while G > 1 and T % G != 0:
            G -= 1
    else:
        G = 1

    if G > 1:
        td = time_decision.reshape(B, T // G, G * C)   # free reshape
        T_eff = T // G
        C_blk = G * C          # lane-dense (<= 128) input/accumulator width
        c_blocks = 1
        C_out_blk = C
    else:
        td = time_decision
        T_eff = T
        # Give v7x's 2nd TensorCore work when the batch axis has one block.
        if b_blocks < 2 and C % 256 == 0:
            C_blk = C // 2     # multiple of 128 by construction
        else:
            C_blk = C
        c_blocks = C // C_blk
        C_out_blk = C_blk

    # ---- time (reduction) tiling --------------------------------------------
    # ~6 MiB per input buffer (double-buffered by the pipeline): big enough to
    # hide per-step overhead at v7x's 3.2 TB/s, small enough for every
    # generation's VMEM. T_tile rounded to the dtype's sublane packing.
    sub = max(8, 32 // itemsize)                 # 8 f32 / 16 bf16 / 32 int8
    budget = 6 * 1024 * 1024
    row_bytes = TB * C_blk * itemsize
    target_rows = max(1, budget // row_bytes)
    if target_rows >= T_eff:
        T_tile = T_eff                           # single full-T block
    else:
        T_tile = max(sub, (target_rows // sub) * sub)
        T_tile = min(T_tile, T_eff)
    t_blocks = _cdiv(T_eff, T_tile)
    needs_t_mask = (T_eff % T_tile) != 0

    grid = (b_blocks, c_blocks, t_blocks)

    kernel = _make_kernel(G, C, T_eff, T_tile, needs_t_mask)

    cost = pl.CostEstimate(
        flops=3 * B * T * C,
        transcendentals=0,
        bytes_accessed=B * T * C * itemsize + B * C * itemsize,
    )

    out = pl.pallas_call(
        kernel,
        out_shape=jax.ShapeDtypeStruct((B, C), dtype),
        grid_spec=pltpu.PrefetchScalarGridSpec(
            num_scalar_prefetch=0,
            grid=grid,
            in_specs=[
                pl.BlockSpec((TB, T_tile, C_blk), lambda b, c, t: (b, t, c)),
            ],
            out_specs=pl.BlockSpec((TB, C_out_blk), lambda b, c, t: (b, c)),
            scratch_shapes=[
                pltpu.VMEM((TB, C_blk), jnp.float32),
                pltpu.VMEM((TB, C_blk), jnp.float32),
            ],
        ),
        compiler_params=pltpu.CompilerParams(
            # Batch and channel axes shard across TensorCores (v7x megacore);
            # T is the reduction axis and must be "arbitrary".
            dimension_semantics=("parallel", "parallel", "arbitrary"),
            vmem_limit_bytes=48 * 1024 * 1024,
        ),
        cost_estimate=cost,
    )(td)

    return out


def _reference(logits, time_decision):
    # pure-JAX reference mirroring the PyTorch forward
    return (time_decision ** 2).sum(axis=1) / time_decision.sum(axis=1)


if __name__ == "__main__":
    key = jax.random.PRNGKey(0)
    k1, k2 = jax.random.split(key)

    B, T, C = 2, 8, 32
    logits = jax.random.normal(k1, (B, T, C), dtype=jnp.float32)
    # time_decision is a probability-like tensor in the original usage
    time_decision = jax.nn.sigmoid(jax.random.normal(k2, (B, T, C), dtype=jnp.float32))

    out = linear_soft_pool(logits, time_decision)
    out = jax.block_until_ready(out)

    ref = _reference(logits, time_decision)
    assert out.shape == (B, C), out.shape
    assert jnp.allclose(out, ref, atol=1e-5, rtol=1e-5), (
        "mismatch vs reference", float(jnp.max(jnp.abs(out - ref)))
    )

    print("KERNEL_OK")
</pallas_src>

<mosaic_0001>
module attributes {stable_mosaic.version = 11 : i64} {
  func.func @kernel(%arg0: i32, %arg1: i32, %arg2: i32, %arg3: memref<2x2x128xf32, #tpu.memory_space<vmem>>, %arg4: memref<2x32xf32, #tpu.memory_space<vmem>>, %arg5: memref<2x128xf32, #tpu.memory_space<vmem>>, %arg6: memref<2x128xf32, #tpu.memory_space<vmem>>) attributes {dimension_semantics = [#tpu.dimension_semantics<parallel>, #tpu.dimension_semantics<parallel>, #tpu.dimension_semantics<arbitrary>], iteration_bounds = array<i64: 1, 1, 1>, scalar_prefetch = 0 : i64, scratch_operands = 2 : i64, tpu.core_type = #tpu.core_type<tc>, window_params = [{transform_indices = @transform_0, window_bounds = array<i64: 2, 2, 128>}, {transform_indices = @transform_1, window_bounds = array<i64: 2, 32>}]} {
    %c0_i32 = arith.constant 0 : i32
    %0 = arith.cmpi eq, %arg2, %c0_i32 : i32
    %1 = arith.extui %0 : i1 to i32
    %c0_i32_0 = arith.constant 0 : i32
    %2 = arith.cmpi ne, %1, %c0_i32_0 : i32
    scf.if %2 {
      %cst_14 = arith.constant 0.000000e+00 : f32
      %16 = vector.broadcast %cst_14 : f32 to vector<2x128xf32>
      %c0_15 = arith.constant 0 : index
      %c0_16 = arith.constant 0 : index
      %17 = vector.load %arg5[%c0_15, %c0_16] : memref<2x128xf32, #tpu.memory_space<vmem>>, vector<2x128xf32>
      tpu.vector_store %arg5[%c0_15, %c0_16], %16 {strides = array<i32>} : memref<2x128xf32, #tpu.memory_space<vmem>>, vector<2x128xf32>,
      %cst_17 = arith.constant 0.000000e+00 : f32
      %18 = vector.broadcast %cst_17 : f32 to vector<2x128xf32>
      %c0_18 = arith.constant 0 : index
      %c0_19 = arith.constant 0 : index
      %19 = vector.load %arg6[%c0_18, %c0_19] : memref<2x128xf32, #tpu.memory_space<vmem>>, vector<2x128xf32>
      tpu.vector_store %arg6[%c0_18, %c0_19], %18 {strides = array<i32>} : memref<2x128xf32, #tpu.memory_space<vmem>>, vector<2x128xf32>,
    } else {
    }
    %c0 = arith.constant 0 : index
    %c0_1 = arith.constant 0 : index
    %c0_2 = arith.constant 0 : index
    %3 = vector.load %arg3[%c0, %c0_1, %c0_2] : memref<2x2x128xf32, #tpu.memory_space<vmem>>, vector<2x2x128xf32>
    %c0_3 = arith.constant 0 : index
    %c0_4 = arith.constant 0 : index
    %4 = vector.load %arg5[%c0_3, %c0_4] : memref<2x128xf32, #tpu.memory_space<vmem>>, vector<2x128xf32>
    %5 = arith.mulf %3, %3 : vector<2x2x128xf32>
    %cst = arith.constant dense<0.000000e+00> : vector<2x128xf32>
    %6 = vector.multi_reduction <add>, %5, %cst [1] : vector<2x2x128xf32> to vector<2x128xf32>
    %7 = arith.addf %4, %6 : vector<2x128xf32>
    %c0_5 = arith.constant 0 : index
    %c0_6 = arith.constant 0 : index
    %8 = vector.load %arg5[%c0_5, %c0_6] : memref<2x128xf32, #tpu.memory_space<vmem>>, vector<2x128xf32>
    tpu.vector_store %arg5[%c0_5, %c0_6], %7 {strides = array<i32>} : memref<2x128xf32, #tpu.memory_space<vmem>>, vector<2x128xf32>,
    %c0_7 = arith.constant 0 : index
    %c0_8 = arith.constant 0 : index
    %9 = vector.load %arg6[%c0_7, %c0_8] : memref<2x128xf32, #tpu.memory_space<vmem>>, vector<2x128xf32>
    %cst_9 = arith.constant dense<0.000000e+00> : vector<2x128xf32>
    %10 = vector.multi_reduction <add>, %3, %cst_9 [1] : vector<2x2x128xf32> to vector<2x128xf32>
    %11 = arith.addf %9, %10 : vector<2x128xf32>
    %c0_10 = arith.constant 0 : index
    %c0_11 = arith.constant 0 : index
    %12 = vector.load %arg6[%c0_10, %c0_11] : memref<2x128xf32, #tpu.memory_space<vmem>>, vector<2x128xf32>
    tpu.vector_store %arg6[%c0_10, %c0_11], %11 {strides = array<i32>} : memref<2x128xf32, #tpu.memory_space<vmem>>, vector<2x128xf32>,
    %c0_i32_12 = arith.constant 0 : i32
    %13 = arith.cmpi eq, %arg2, %c0_i32_12 : i32
    %14 = arith.extui %13 : i1 to i32
    %c0_i32_13 = arith.constant 0 : i32
    %15 = arith.cmpi ne, %14, %c0_i32_13 : i32
    scf.if %15 {
      %c0_14 = arith.constant 0 : index
      %c0_15 = arith.constant 0 : index
      %16 = vector.load %arg5[%c0_14, %c0_15] : memref<2x128xf32, #tpu.memory_space<vmem>>, vector<2x128xf32>
      %c0_16 = arith.constant 0 : index
      %c0_17 = arith.constant 0 : index
      %17 = vector.load %arg6[%c0_16, %c0_17] : memref<2x128xf32, #tpu.memory_space<vmem>>, vector<2x128xf32>
      %18 = vector.extract_strided_slice %16 {offsets = [0, 0], sizes = [2, 32], strides = [1, 1]} : vector<2x128xf32> to vector<2x32xf32>
      %19 = vector.extract_strided_slice %17 {offsets = [0, 0], sizes = [2, 32], strides = [1, 1]} : vector<2x128xf32> to vector<2x32xf32>
      %20 = vector.extract_strided_slice %16 {offsets = [0, 32], sizes = [2, 32], strides = [1, 1]} : vector<2x128xf32> to vector<2x32xf32>
      %21 = arith.addf %18, %20 : vector<2x32xf32>
      %22 = vector.extract_strided_slice %17 {offsets = [0, 32], sizes = [2, 32], strides = [1, 1]} : vector<2x128xf32> to vector<2x32xf32>
      %23 = arith.addf %19, %22 : vector<2x32xf32>
      %24 = vector.extract_strided_slice %16 {offsets = [0, 64], sizes = [2, 32], strides = [1, 1]} : vector<2x128xf32> to vector<2x32xf32>
      %25 = arith.addf %21, %24 : vector<2x32xf32>
      %26 = vector.extract_strided_slice %17 {offsets = [0, 64], sizes = [2, 32], strides = [1, 1]} : vector<2x128xf32> to vector<2x32xf32>
      %27 = arith.addf %23, %26 : vector<2x32xf32>
      %28 = vector.extract_strided_slice %16 {offsets = [0, 96], sizes = [2, 32], strides = [1, 1]} : vector<2x128xf32> to vector<2x32xf32>
      %29 = arith.addf %25, %28 : vector<2x32xf32>
      %30 = vector.extract_strided_slice %17 {offsets = [0, 96], sizes = [2, 32], strides = [1, 1]} : vector<2x128xf32> to vector<2x32xf32>
      %31 = arith.addf %27, %30 : vector<2x32xf32>
      %32 = tpu.reciprocal %31 : vector<2x32xf32> -> vector<2x32xf32>
      %33 = arith.mulf %29, %32 : vector<2x32xf32>
      %c0_18 = arith.constant 0 : index
      %c0_19 = arith.constant 0 : index
      %34 = vector.load %arg4[%c0_18, %c0_19] : memref<2x32xf32, #tpu.memory_space<vmem>>, vector<2x32xf32>
      tpu.vector_store %arg4[%c0_18, %c0_19], %33 {strides = array<i32>} : memref<2x32xf32, #tpu.memory_space<vmem>>, vector<2x32xf32>,
    } else {
    }
    return
  }
  func.func @transform_0(%arg0: i32, %arg1: i32, %arg2: i32) -> (i32, i32, i32) {
    %c0_i32 = arith.constant 0 : i32
    return %arg0, %arg2, %arg1 : i32, i32, i32
  }
  func.func @transform_1(%arg0: i32, %arg1: i32, %arg2: i32) -> (i32, i32) {
    %c0_i32 = arith.constant 0 : i32
    return %arg0, %arg1 : i32, i32
  }
}

</mosaic_0001>

<llo_original>
// kernel: tpu_custom_call.1
$region0: #{tpu_custom_call.1}
  #allocation0 [shape = 'u32[]', space=smem, size = 0x4, offset = 0x4, fixed_abs, tag = 'smem constant byte address 0x4 - core index']
  #allocation1 [shape = 'u32[144,128]{1,0:T(1,128)}', space=vmem, size = 0x12000, scoped, tag = 'internal scratch']
  #allocation2 [shape = 'f32[2,128]{1,0:T(2,128)}', space=vmem, size = 0x400, scoped, tag = 'scratch operand']
  #allocation3 [shape = 'f32[2,128]{1,0:T(2,128)}', space=vmem, size = 0x400, scoped, tag = 'scratch operand']
  %s0 = inlined_call_operand.hbm [shape: f32[2,2,128], index: 0, kind: input, shape index: {}]
  %s1 = inlined_call_operand.hbm [shape: f32[2,32], index: 1, kind: output, shape index: {}]
  %s2 = sld [smem:[#allocation0]]
  $region26: #{tpu_custom_call.1} parent=0
    _
  %s4 = ssub.s32 1, %s2
  %s5 = scalar_select 0, %s4, %s2
  $region1: #{tpu_custom_call.1} parent=0
    #allocation4 [shape = 'u8[2048]{0}', space=vmem, size = 0x800, scoped, tag = 'input window, operand 0, single buffered']
    #allocation5 [shape = 's32[1]{0}', space=sflag, size = 0x4, scoped, tag = 'scoped memory for tpu_custom_call.1']
    #allocation6 [shape = 's32[1]{0}', space=sflag, size = 0x4, scoped, tag = 'scoped memory for tpu_custom_call.1']
    #allocation7 [shape = 'u8[1024]{0}', space=vmem, size = 0x400, scoped, tag = 'output window, operand 0, single buffered']
    %6 = vsyncpa [#allocation5], 0
    %7 = vsyncpa [#allocation6], 0
    // Predicated region
    $region2: #{tpu_custom_call.1} parent=1 // pred_check
      _
    $region3: #{tpu_custom_call.1} parent=1 // pred_check_branch
      %9 = sbr.rel (0) target = $region5
    $region4: #{tpu_custom_call.1} parent=1 // pred_region
      %s11 = ssub.s32 64, 64
      %12 = vsyncadd [#allocation5], %s11
      %s13 = sshll.u32 [#allocation4], 4
      %s14 = int_to_ptr.vmem [resolvable:$true] %s13
      %19 = dma.hbm_to_vmem [thread:$0]  %s0, 64, %s14, [#allocation5], 32, 32, 2
    $region5: #{tpu_custom_call.1} parent=1 // pred_fallthru
      _
    // Predicated region
    $region6: #{tpu_custom_call.1} parent=1 // pred_check
      _
    $region7: #{tpu_custom_call.1} parent=1 // pred_check_branch
      %21 = sbr.rel (0) target = $region9
    $region8: #{tpu_custom_call.1} parent=1 // pred_region
      %22 = dma.done [#allocation5], 64
    $region9: #{tpu_custom_call.1} parent=1 // pred_fallthru
      _
    %p23 = scmp.eq.s32.totalorder 0, 0
    // Predicated region
    $region10: #{tpu_custom_call.1} parent=1 // pred_check
      %p24 = pneg %p23
    $region11: #{tpu_custom_call.1} parent=1 // pred_check_branch
      %26 = sbr.rel (%p24) target = $region13
    $region12: #{tpu_custom_call.1} parent=1 // pred_region
      %27 = vst [vmem:[#allocation2] sm:$0x3] 0.0
      %28 = vst [vmem:[#allocation3] sm:$0x3] 0.0
    $region13: #{tpu_custom_call.1} parent=1 // pred_fallthru
      _
    %v29 = vld [vmem:[#allocation4] sm:$0x3]
    %v30 = vld [vmem:[#allocation4 + $0x2] sm:$0x3]
    %v31 = vld [vmem:[#allocation2] sm:$0x3]
    %v32 = vmul.f32 %v29, %v29
    %v33 = vmul.f32 %v30, %v30
    %vm34 = vcmask 1041408
    %v35 = vsel %vm34, %v32, 0.0
    %v36 = vrot.slane %v35, 4
    %v37 = vadd.f32 %v35, %v36
    %v38 = vrot.slane %v37, 2
    %v39 = vadd.f32 %v37, %v38
    %v40 = vrot.slane %v39, 1
    %v41 = vadd.f32 %v39, %v40
    %v42 = vsel %vm34, %v33, 0.0
    %v43 = vrot.slane %v42, 4
    %v44 = vadd.f32 %v42, %v43
    %v45 = vrot.slane %v44, 2
    %v46 = vadd.f32 %v44, %v45
    %v47 = vrot.slane %v46, 1
    %v48 = vadd.f32 %v46, %v47
    %vm51 = vcmask 1041409
    %v52 = vsel %vm51, %v48, %v41
    %v54 = vadd.f32 %v31, %v52
    %55 = vst [vmem:[#allocation2] sm:$0x3] %v54
    %v56 = vld [vmem:[#allocation3] sm:$0x3]
    %v57 = vsel %vm34, %v29, 0.0
    %v58 = vrot.slane %v57, 4
    %v59 = vadd.f32 %v57, %v58
    %v60 = vrot.slane %v59, 2
    %v61 = vadd.f32 %v59, %v60
    %v62 = vrot.slane %v61, 1
    %v63 = vadd.f32 %v61, %v62
    %v64 = vsel %vm34, %v30, 0.0
    %v65 = vrot.slane %v64, 4
    %v66 = vadd.f32 %v64, %v65
    %v67 = vrot.slane %v66, 2
    %v68 = vadd.f32 %v66, %v67
    %v69 = vrot.slane %v68, 1
    %v70 = vadd.f32 %v68, %v69
    %v73 = vsel %vm51, %v70, %v63
    %v75 = vadd.f32 %v56, %v73
    %76 = vst [vmem:[#allocation3] sm:$0x3] %v75
    // Predicated region
    $region14: #{tpu_custom_call.1} parent=1 // pred_check
      %p77 = pneg %p23
    $region15: #{tpu_custom_call.1} parent=1 // pred_check_branch
      %79 = sbr.rel (%p77) target = $region17
    $region16: #{tpu_custom_call.1} parent=1 // pred_region
      %v80 = vld [vmem:[#allocation2] sm:$0x3]
      %v81 = vld [vmem:[#allocation3] sm:$0x3]
      %83 = vrot.lane.b32.xlu0 %v80, 96
      %v84 = vpop.permute.xlu0 %83
      %v86 = vadd.f32 %v80, %v84
      %88 = vrot.lane.b32.xlu0 %v81, 96
      %v89 = vpop.permute.xlu0 %88
      %v91 = vadd.f32 %v81, %v89
      %92 = vrot.lane.b32.xlu0 %v80, 64
      %v93 = vpop.permute.xlu0 %92
      %v95 = vadd.f32 %v86, %v93
      %96 = vrot.lane.b32.xlu0 %v81, 64
      %v97 = vpop.permute.xlu0 %96
      %v99 = vadd.f32 %v91, %v97
      %100 = vrot.lane.b32.xlu0 %v80, 32
      %v101 = vpop.permute.xlu0 %100
      %v103 = vadd.f32 %v95, %v101
      %104 = vrot.lane.b32.xlu0 %v81, 32
      %v105 = vpop.permute.xlu0 %104
      %v107 = vadd.f32 %v99, %v105
      %v108 = vrcp.pop %v107
      %v109 = vmul.f32 %v103, %v108
      %vm110 = vcmask 254976
      %111 = vst.msk [vmem:[#allocation7] sm:$0x3] %vm110, %v109
    $region17: #{tpu_custom_call.1} parent=1 // pred_fallthru
      _
    // Predicated region
    $region18: #{tpu_custom_call.1} parent=1 // pred_check
      _
    $region19: #{tpu_custom_call.1} parent=1 // pred_check_branch
      %113 = sbr.rel (0) target = $region21
    $region20: #{tpu_custom_call.1} parent=1 // pred_region
      %s115 = ssub.s32 32, 32
      %116 = vsyncadd [#allocation6], %s115
      %s118 = sshll.u32 [#allocation7], 4
      %s119 = int_to_ptr.vmem [resolvable:$true] %s118
      %121 = dma.vmem_to_hbm [thread:$0]  %s119, 32, %s1, [#allocation6]
    $region21: #{tpu_custom_call.1} parent=1 // pred_fallthru
      _
    // Predicated region
    $region22: #{tpu_custom_call.1} parent=1 // pred_check
      _
    $region23: #{tpu_custom_call.1} parent=1 // pred_check_branch
      %123 = sbr.rel (0) target = $region25
    $region24: #{tpu_custom_call.1} parent=1 // pred_region
      %124 = dma.done [#allocation6], 32
    $region25: #{tpu_custom_call.1} parent=1 // pred_fallthru
      _
    %125 = vsyncpa [#allocation5], 1
    %126 = vsyncpa [#allocation6], 1

</llo_original>
